<compile_context>
chip_gen: v6e
topology: v6e:2x2x1
jax: 0.10.0
libtpu: 0.0.40
codegen_flags: <defaults>
</compile_context>

<pallas_src>
import jax
import jax.numpy as jnp
from jax.experimental import pallas as pl
from jax.experimental.pallas import tpu as pltpu


def _frac_matmul_kernel(x_ref, w_ref, o_ref):
    # x_ref: (TM, CN) packed rows (batch-flattened, channels along lanes), f32
    # w_ref: (CN, CN) block-diagonal folded weight (resident across the grid)
    # o_ref: (TM, CN)
    x = x_ref[...]
    w = w_ref[...]
    if x.dtype != w.dtype:
        x = x.astype(w.dtype)        # in-kernel cast: no extra HBM round trip
    o_ref[...] = jnp.dot(x, w, preferred_element_type=jnp.float32).astype(o_ref.dtype)


def _round_up(x: int, m: int) -> int:
    return ((x + m - 1) // m) * m


def _choose_tm(m_rows: int, tm_max: int, min_steps: int = 4) -> int:
    """Row-tile size: large enough to amortize per-step overhead, small enough
    that the grid has >= min_steps steps (megacore sharding) and never larger
    than the (rounded-up) row count."""
    target = _round_up(pl.cdiv(m_rows, min_steps), 16)
    tm = min(tm_max, max(target, 16))
    tm = min(tm, _round_up(m_rows, 16))
    return max(tm, 16)


def regressive_fractional_forward(data, w, V, Vinv, gamma, *,
                                  use_bf16=True, out_dtype=jnp.float32,
                                  tm_max=2048):
    """Eval-mode forward of RegressiveFractional.

    data : (..., C, N)   activations (any float dtype, computed in f32)
    w    : (N,)          eigenvalues (must be > 0, as in the PyTorch module)
    V    : (N, N)        eigenvectors
    Vinv : (N, N)        inverse of V (V^T when V orthogonal)
    gamma: (C,)          per-channel exponent
    """
    orig_shape = data.shape
    N = w.shape[0]
    C = gamma.shape[0]
    assert data.shape[-1] == N and data.shape[-2] == C

    f32 = jnp.float32
    w32 = w.astype(f32)
    V32 = V.astype(f32)
    Vinv32 = Vinv.astype(f32)
    g32 = gamma.astype(f32)

    # ---- offline weight folding (tiny: (C, N, N) with C=4, N=64) ----
    # L[c, j] = w[j] ** gamma[c];  W_c[k, i] = sum_j Vinv[j,k] * L[c,j] * V[i,j]
    L = jnp.power(w32[None, :], g32[:, None])                    # (C, N)
    Wc = jnp.einsum('jk,cj,ij->cki', Vinv32, L, V32)             # (C, N, N)

    CN = C * N
    # Block-diagonal packed weight: all channels in one lane-dense MXU pass.
    W_bd = jnp.einsum('cd,cki->ckdi', jnp.eye(C, dtype=f32), Wc).reshape(CN, CN)

    w_dtype = jnp.bfloat16 if use_bf16 else f32
    W_op = W_bd.astype(w_dtype)

    # ---- pack the input: rows = flattened batch, lanes = (channel, dof) ----
    # (contiguous reshape — no copy; no padding, no standalone cast)
    x = data.reshape(-1, CN).astype(f32)                         # (M, C*N)
    M = x.shape[0]

    x_bytes = 4
    w_bytes = jnp.dtype(w_dtype).itemsize
    o_bytes = jnp.dtype(out_dtype).itemsize

    TM = _choose_tm(M, tm_max)
    vmem_budget = 40 << 20                                       # headroom vs v7x 64 MiB

    def _working_set(tm):
        # double-buffered x tile + out tile + (double-buffered) resident weight
        return 2 * tm * CN * x_bytes + 2 * tm * CN * o_bytes + 2 * CN * CN * w_bytes

    while TM > 16 and _working_set(TM) > vmem_budget:
        TM = max(16, _round_up(TM // 2, 16))

    need = _working_set(TM)
    vmem_limit = int(min(48 << 20, max(2 * need, 16 << 20)))

    grid = (pl.cdiv(M, TM),)

    out = pl.pallas_call(
        _frac_matmul_kernel,
        out_shape=jax.ShapeDtypeStruct((M, CN), out_dtype),
        grid=grid,
        in_specs=[
            pl.BlockSpec((TM, CN), lambda i: (i, 0)),            # pipelined row tiles
            pl.BlockSpec((CN, CN), lambda i: (0, 0)),            # resident weight
        ],
        out_specs=pl.BlockSpec((TM, CN), lambda i: (i, 0)),
        compiler_params=pltpu.CompilerParams(
            dimension_semantics=("parallel",),
            vmem_limit_bytes=vmem_limit,
        ),
    )(x, W_op)

    return out.reshape(orig_shape)


def _reference(data, w, V, Vinv, gamma):
    alpha = jnp.einsum('ik,...k->...i', Vinv, data)
    L = jnp.power(w[None, :], gamma[:, None])
    return jnp.einsum('...cj,ij,cj->...ci', alpha, V, L)


if __name__ == "__main__":
    key = jax.random.PRNGKey(0)
    k_data, k_v, k_g, k_data2 = jax.random.split(key, 4)

    # Small shapes consistent with the module: n_dofs=64, n_channels=4.
    C, N = 4, 64
    # Deterministic synthetic operator: positive eigenvalues, orthogonal V,
    # Vinv = V^T.  Non-zero gamma so the spectral scaling is non-trivial.
    w = jnp.linspace(0.5, 20.0, N).astype(jnp.float32)
    V, _ = jnp.linalg.qr(jax.random.normal(k_v, (N, N), dtype=jnp.float32))
    Vinv = V.T
    gamma = 0.2 * jax.random.normal(k_g, (C,), dtype=jnp.float32)

    # --- Test 1: small batch, f32 operands, tight tolerance ---
    data = jax.random.normal(k_data, (2, C, N), dtype=jnp.float32)
    out = regressive_fractional_forward(data, w, V, Vinv, gamma, use_bf16=False)
    out = jax.block_until_ready(out)
    ref = _reference(data, w, V, Vinv, gamma)
    assert out.shape == data.shape
    assert jnp.allclose(out, ref, rtol=1e-3, atol=1e-3), "f32 mismatch vs reference"

    # --- Test 2: larger batch to exercise multi-step row tiling and the
    # ragged (masked) last block, with bf16 MXU operands (looser tolerance) ---
    data2 = jax.random.normal(k_data2, (3, 50, C, N), dtype=jnp.float32)
    out2 = regressive_fractional_forward(data2, w, V, Vinv, gamma,
                                         use_bf16=True, tm_max=64)
    out2 = jax.block_until_ready(out2)
    ref2 = _reference(data2, w, V, Vinv, gamma)
    assert out2.shape == data2.shape
    rel_err = jnp.max(jnp.abs(out2 - ref2)) / (jnp.max(jnp.abs(ref2)) + 1e-12)
    assert rel_err < 3e-2, f"bf16 mismatch vs reference (rel err {rel_err})"

    # --- Test 3: bf16 output path (downstream consumer takes bf16) ---
    out3 = regressive_fractional_forward(data, w, V, Vinv, gamma,
                                         use_bf16=True, out_dtype=jnp.bfloat16)
    out3 = jax.block_until_ready(out3)
    assert out3.dtype == jnp.bfloat16 and out3.shape == data.shape
    rel_err3 = (jnp.max(jnp.abs(out3.astype(jnp.float32) - ref))
                / (jnp.max(jnp.abs(ref)) + 1e-12))
    assert rel_err3 < 3e-2, f"bf16-out mismatch vs reference (rel err {rel_err3})"

    print("KERNEL_OK")
</pallas_src>

<mosaic_0001>
module attributes {stable_mosaic.version = 11 : i64} {
  func.func @_frac_matmul_kernel(%arg0: i32, %arg1: memref<16x256xf32, #tpu.memory_space<vmem>>, %arg2: memref<256x256xf32, #tpu.memory_space<vmem>>, %arg3: memref<16x256xf32, #tpu.memory_space<vmem>>) attributes {dimension_semantics = [#tpu.dimension_semantics<parallel>], iteration_bounds = array<i64: 1>, scalar_prefetch = 0 : i64, scratch_operands = 0 : i64, tpu.core_type = #tpu.core_type<tc>, window_params = [{transform_indices = @transform_0, window_bounds = array<i64: 16, 256>}, {pipeline_mode = #tpu.pipeline_mode<synchronous>, transform_indices = @transform_1, window_bounds = array<i64: 256, 256>}, {transform_indices = @transform_2, window_bounds = array<i64: 16, 256>}]} {
    %c0 = arith.constant 0 : index
    %c0_0 = arith.constant 0 : index
    %0 = vector.load %arg1[%c0, %c0_0] : memref<16x256xf32, #tpu.memory_space<vmem>>, vector<16x256xf32>
    %c0_1 = arith.constant 0 : index
    %c0_2 = arith.constant 0 : index
    %1 = vector.load %arg2[%c0_1, %c0_2] : memref<256x256xf32, #tpu.memory_space<vmem>>, vector<256x256xf32>
    %cst = arith.constant dense<0.000000e+00> : vector<16x256xf32>
    %2 = tpu.matmul %0, %1, %cst {dimension_numbers = #tpu.dot_dimension_numbers<[1], [0], [0], [1], [0, 0, 1, 1], [], []>} : vector<16x256xf32>, vector<256x256xf32>, vector<16x256xf32> -> vector<16x256xf32>
    %c0_3 = arith.constant 0 : index
    %c0_4 = arith.constant 0 : index
    %3 = vector.load %arg3[%c0_3, %c0_4] : memref<16x256xf32, #tpu.memory_space<vmem>>, vector<16x256xf32>
    tpu.vector_store %arg3[%c0_3, %c0_4], %2 {strides = array<i32>} : memref<16x256xf32, #tpu.memory_space<vmem>>, vector<16x256xf32>,
    return
  }
  func.func @transform_0(%arg0: i32) -> (i32, i32) {
    %c0_i32 = arith.constant 0 : i32
    %c0_i32_0 = arith.constant 0 : i32
    return %arg0, %c0_i32 : i32, i32
  }
  func.func @transform_1(%arg0: i32) -> (i32, i32) {
    %c0_i32 = arith.constant 0 : i32
    %c0_i32_0 = arith.constant 0 : i32
    %c0_i32_1 = arith.constant 0 : i32
    return %c0_i32, %c0_i32_0 : i32, i32
  }
  func.func @transform_2(%arg0: i32) -> (i32, i32) {
    %c0_i32 = arith.constant 0 : i32
    %c0_i32_0 = arith.constant 0 : i32
    return %arg0, %c0_i32 : i32, i32
  }
}

</mosaic_0001>

<llo_original>
// kernel: tpu_custom_call.1
$region0: #{tpu_custom_call.1}
  #allocation0 [shape = 'u32[]', space=smem, size = 0x4, offset = 0x4, fixed_abs, tag = 'smem constant byte address 0x4 - core index']
  #allocation1 [shape = 'u32[144,128]{1,0:T(1,128)}', space=vmem, size = 0x12000, scoped, tag = 'internal scratch']
  %s0 = inlined_call_operand.hbm [shape: f32[2,256], index: 0, kind: input, shape index: {}]
  %s1 = inlined_call_operand.hbm [shape: f32[256,256], index: 1, kind: input, shape index: {}]
  %s2 = inlined_call_operand.hbm [shape: f32[2,256], index: 2, kind: output, shape index: {}]
  %s3 = sld [smem:[#allocation0]]
  $region26: #{tpu_custom_call.1} parent=0
    _
  %s5 = ssub.s32 1, %s3
  %s6 = scalar_select 0, %s5, %s3
  $region1: #{tpu_custom_call.1} parent=0
    #allocation2 [shape = 'u8[16384]{0}', space=vmem, size = 0x4000, scoped, tag = 'input window, operand 0, single buffered']
    #allocation3 [shape = 's32[1]{0}', space=sflag, size = 0x4, scoped, tag = 'scoped memory for tpu_custom_call.1']
    #allocation4 [shape = 's32[1]{0}', space=sflag, size = 0x4, scoped, tag = 'scoped memory for tpu_custom_call.1']
    #allocation5 [shape = 'u8[262144]{0}', space=vmem, size = 0x40000, scoped, tag = 'input window, operand 1, single buffered']
    #allocation6 [shape = 's32[1]{0}', space=sflag, size = 0x4, scoped, tag = 'scoped memory for tpu_custom_call.1']
    #allocation7 [shape = 'u8[16384]{0}', space=vmem, size = 0x4000, scoped, tag = 'output window, operand 0, single buffered']
    %7 = vsyncpa [#allocation3], 0
    %8 = vsyncpa [#allocation6], 0
    %9 = vsyncpa [#allocation4], 0
    // Predicated region
    $region2: #{tpu_custom_call.1} parent=1 // pred_check
      _
    $region3: #{tpu_custom_call.1} parent=1 // pred_check_branch
      %11 = sbr.rel (0) target = $region5
    $region4: #{tpu_custom_call.1} parent=1 // pred_region
      %s13 = ssub.s32 512, 64
      %14 = vsyncadd [#allocation3], %s13
      %s15 = sshll.u32 [#allocation2], 4
      %s16 = int_to_ptr.vmem [resolvable:$true] %s15
      %21 = dma.hbm_to_vmem [thread:$0]  %s0, 64, %s16, [#allocation3], 64, 64, 4
    $region5: #{tpu_custom_call.1} parent=1 // pred_fallthru
      _
    // Predicated region
    $region6: #{tpu_custom_call.1} parent=1 // pred_check
      _
    $region7: #{tpu_custom_call.1} parent=1 // pred_check_branch
      %23 = sbr.rel (0) target = $region9
    $region8: #{tpu_custom_call.1} parent=1 // pred_region
      %s25 = ssub.s32 8192, 8192
      %26 = vsyncadd [#allocation6], %s25
      %s27 = sshll.u32 [#allocation5], 4
      %s28 = int_to_ptr.vmem [resolvable:$true] %s27
      %33 = dma.hbm_to_vmem [thread:$0]  %s1, 8192, %s28, [#allocation6], 256, 256, 16
    $region9: #{tpu_custom_call.1} parent=1 // pred_fallthru
      _
    // Predicated region
    $region10: #{tpu_custom_call.1} parent=1 // pred_check
      _
    $region11: #{tpu_custom_call.1} parent=1 // pred_check_branch
      %35 = sbr.rel (0) target = $region13
    $region12: #{tpu_custom_call.1} parent=1 // pred_region
      %36 = dma.done [#allocation3], 512
    $region13: #{tpu_custom_call.1} parent=1 // pred_fallthru
      _
    // Predicated region
    $region14: #{tpu_custom_call.1} parent=1 // pred_check
      _
    $region15: #{tpu_custom_call.1} parent=1 // pred_check_branch
      %38 = sbr.rel (0) target = $region17
    $region16: #{tpu_custom_call.1} parent=1 // pred_region
      %39 = dma.done [#allocation6], 8192
    $region17: #{tpu_custom_call.1} parent=1 // pred_fallthru
      _
    %v40 = vld [vmem:[#allocation2] sm:$0xf]
    %v41 = vld [vmem:[#allocation2 + $0x4] sm:$0xf]
    %v42 = vld [vmem:[#allocation2 + $0x8] sm:$0xf]
    %v43 = vld [vmem:[#allocation2 + $0xc] sm:$0xf]
    %v44 = vld [vmem:[#allocation2 + $0x10] sm:$0xf]
    %v45 = vld [vmem:[#allocation2 + $0x14] sm:$0xf]
    %v46 = vld [vmem:[#allocation2 + $0x18] sm:$0xf]
    %v47 = vld [vmem:[#allocation2 + $0x1c] sm:$0xf]
    %v48 = vld [vmem:[#allocation5] sm:$0xff]
    %v49 = vld [vmem:[#allocation5 + $0x8] sm:$0xff]
    %v50 = vld [vmem:[#allocation5 + $0x10] sm:$0xff]
    %v51 = vld [vmem:[#allocation5 + $0x18] sm:$0xff]
    %v52 = vld [vmem:[#allocation5 + $0x20] sm:$0xff]
    %v53 = vld [vmem:[#allocation5 + $0x28] sm:$0xff]
    %v54 = vld [vmem:[#allocation5 + $0x30] sm:$0xff]
    %v55 = vld [vmem:[#allocation5 + $0x38] sm:$0xff]
    %v56 = vld [vmem:[#allocation5 + $0x40] sm:$0xff]
    %v57 = vld [vmem:[#allocation5 + $0x48] sm:$0xff]
    %v58 = vld [vmem:[#allocation5 + $0x50] sm:$0xff]
    %v59 = vld [vmem:[#allocation5 + $0x58] sm:$0xff]
    %v60 = vld [vmem:[#allocation5 + $0x60] sm:$0xff]
    %v61 = vld [vmem:[#allocation5 + $0x68] sm:$0xff]
    %v62 = vld [vmem:[#allocation5 + $0x70] sm:$0xff]
    %v63 = vld [vmem:[#allocation5 + $0x78] sm:$0xff]
    %v64 = vld [vmem:[#allocation5 + $0x80] sm:$0xff]
    %v65 = vld [vmem:[#allocation5 + $0x88] sm:$0xff]
    %v66 = vld [vmem:[#allocation5 + $0x90] sm:$0xff]
    %v67 = vld [vmem:[#allocation5 + $0x98] sm:$0xff]
    %v68 = vld [vmem:[#allocation5 + $0xa0] sm:$0xff]
    %v69 = vld [vmem:[#allocation5 + $0xa8] sm:$0xff]
    %v70 = vld [vmem:[#allocation5 + $0xb0] sm:$0xff]
    %v71 = vld [vmem:[#allocation5 + $0xb8] sm:$0xff]
    %v72 = vld [vmem:[#allocation5 + $0xc0] sm:$0xff]
    %v73 = vld [vmem:[#allocation5 + $0xc8] sm:$0xff]
    %v74 = vld [vmem:[#allocation5 + $0xd0] sm:$0xff]
    %v75 = vld [vmem:[#allocation5 + $0xd8] sm:$0xff]
    %v76 = vld [vmem:[#allocation5 + $0xe0] sm:$0xff]
    %v77 = vld [vmem:[#allocation5 + $0xe8] sm:$0xff]
    %v78 = vld [vmem:[#allocation5 + $0xf0] sm:$0xff]
    %v79 = vld [vmem:[#allocation5 + $0xf8] sm:$0xff]
    %v80 = vld [vmem:[#allocation5 + $0x100] sm:$0xff]
    %v81 = vld [vmem:[#allocation5 + $0x108] sm:$0xff]
    %v82 = vld [vmem:[#allocation5 + $0x110] sm:$0xff]
    %v83 = vld [vmem:[#allocation5 + $0x118] sm:$0xff]
    %v84 = vld [vmem:[#allocation5 + $0x120] sm:$0xff]
    %v85 = vld [vmem:[#allocation5 + $0x128] sm:$0xff]
    %v86 = vld [vmem:[#allocation5 + $0x130] sm:$0xff]
    %v87 = vld [vmem:[#allocation5 + $0x138] sm:$0xff]
    %v88 = vld [vmem:[#allocation5 + $0x140] sm:$0xff]
    %v89 = vld [vmem:[#allocation5 + $0x148] sm:$0xff]
    %v90 = vld [vmem:[#allocation5 + $0x150] sm:$0xff]
    %v91 = vld [vmem:[#allocation5 + $0x158] sm:$0xff]
    %v92 = vld [vmem:[#allocation5 + $0x160] sm:$0xff]
    %v93 = vld [vmem:[#allocation5 + $0x168] sm:$0xff]
    %v94 = vld [vmem:[#allocation5 + $0x170] sm:$0xff]
    %v95 = vld [vmem:[#allocation5 + $0x178] sm:$0xff]
    %v96 = vld [vmem:[#allocation5 + $0x180] sm:$0xff]
    %v97 = vld [vmem:[#allocation5 + $0x188] sm:$0xff]
    %v98 = vld [vmem:[#allocation5 + $0x190] sm:$0xff]
    %v99 = vld [vmem:[#allocation5 + $0x198] sm:$0xff]
    %v100 = vld [vmem:[#allocation5 + $0x1a0] sm:$0xff]
    %v101 = vld [vmem:[#allocation5 + $0x1a8] sm:$0xff]
    %v102 = vld [vmem:[#allocation5 + $0x1b0] sm:$0xff]
    %v103 = vld [vmem:[#allocation5 + $0x1b8] sm:$0xff]
    %v104 = vld [vmem:[#allocation5 + $0x1c0] sm:$0xff]
    %v105 = vld [vmem:[#allocation5 + $0x1c8] sm:$0xff]
    %v106 = vld [vmem:[#allocation5 + $0x1d0] sm:$0xff]
    %v107 = vld [vmem:[#allocation5 + $0x1d8] sm:$0xff]
    %v108 = vld [vmem:[#allocation5 + $0x1e0] sm:$0xff]
    %v109 = vld [vmem:[#allocation5 + $0x1e8] sm:$0xff]
    %v110 = vld [vmem:[#allocation5 + $0x1f0] sm:$0xff]
    %v111 = vld [vmem:[#allocation5 + $0x1f8] sm:$0xff]
    %v120 = vcombine.low %v40, %v41
    %v121 = vcombine.low %v42, %v43
    %v123 = vunpack.c.l.s4 1983009808
    %v124 = vunpack.c.0.s8 %v123
    %v125 = vlaneseq
    %v126 = vshrl.u32 %v125, 7
    %v127 = vsub.s32 %v124, %v126
    %v128 = vrot.slane %v120, %v127
    %v130 = vunpack.c.l.s4 1983009808
    %v131 = vunpack.c.0.s8 %v130
    %v132 = vlaneseq
    %v133 = vshrl.u32 %v132, 7
    %v134 = vsub.s32 %v131, %v133
    %v135 = vrot.slane %v121, %v134
    %v136 = vcombine.low %v128, %v135
    %v137 = vcombine.high %v128, %v135
    %v138 = vcombine.low %v44, %v45
    %v139 = vcombine.low %v46, %v47
    %v141 = vunpack.c.l.s4 1983009808
    %v142 = vunpack.c.0.s8 %v141
    %v143 = vlaneseq
    %v144 = vshrl.u32 %v143, 7
    %v145 = vsub.s32 %v142, %v144
    %v146 = vrot.slane %v138, %v145
    %v148 = vunpack.c.l.s4 1983009808
    %v149 = vunpack.c.0.s8 %v148
    %v150 = vlaneseq
    %v151 = vshrl.u32 %v150, 7
    %v152 = vsub.s32 %v149, %v151
    %v153 = vrot.slane %v139, %v152
    %v154 = vcombine.low %v146, %v153
    %v155 = vcombine.high %v146, %v153
    %160 = vmatprep.subr.mxu0 %v79
    %161 = vmatpush1.msra.mxu0 %v78
    %162 = vmatprep.subr.mxu0 %v77
    %163 = vmatpush1.msra.mxu0 %v76
    %164 = vmatprep.subr.mxu0 %v75
    %165 = vmatpush1.msra.mxu0 %v74
    %166 = vmatprep.subr.mxu0 %v73
    %167 = vmatpush1.msra.mxu0 %v72
    %168 = vmatprep.subr.mxu0 %v71
    %169 = vmatpush1.msra.mxu0 %v70
    %170 = vmatprep.subr.mxu0 %v69
    %171 = vmatpush1.msra.mxu0 %v68
    %172 = vmatprep.subr.mxu0 %v67
    %173 = vmatpush1.msra.mxu0 %v66
    %174 = vmatprep.subr.mxu0 %v65
    %175 = vmatpush1.msra.mxu0 %v64
    %176 = vmatprep.subr.mxu0 %v63
    %177 = vmatpush1.msra.mxu0 %v62
    %178 = vmatprep.subr.mxu0 %v61
    %179 = vmatpush1.msra.mxu0 %v60
    %180 = vmatprep.subr.mxu0 %v59
    %181 = vmatpush1.msra.mxu0 %v58
    %182 = vmatprep.subr.mxu0 %v57
    %183 = vmatpush1.msra.mxu0 %v56
    %184 = vmatprep.subr.mxu0 %v55
    %185 = vmatpush1.msra.mxu0 %v54
    %186 = vmatprep.subr.mxu0 %v53
    %187 = vmatpush1.msra.mxu0 %v52
    %188 = vmatprep.subr.mxu0 %v51
    %189 = vmatpush1.msra.mxu0 %v50
    %190 = vmatprep.subr.mxu0 %v49
    %191 = vmatpush1.msra.mxu0 %v48
    %192 = vmatprep.subr.mxu0 %v111
    %193 = vmatpush2.msra.mxu0 %v110
    %194 = vmatprep.subr.mxu0 %v109
    %195 = vmatpush2.msra.mxu0 %v108
    %196 = vmatprep.subr.mxu0 %v107
    %197 = vmatpush2.msra.mxu0 %v106
    %198 = vmatprep.subr.mxu0 %v105
    %199 = vmatpush2.msra.mxu0 %v104
    %200 = vmatprep.subr.mxu0 %v103
    %201 = vmatpush2.msra.mxu0 %v102
    %202 = vmatprep.subr.mxu0 %v101
    %203 = vmatpush2.msra.mxu0 %v100
    %204 = vmatprep.subr.mxu0 %v99
    %205 = vmatpush2.msra.mxu0 %v98
    %206 = vmatprep.subr.mxu0 %v97
    %207 = vmatpush2.msra.mxu0 %v96
    %208 = vmatprep.subr.mxu0 %v95
    %209 = vmatpush2.msra.mxu0 %v94
    %210 = vmatprep.subr.mxu0 %v93
    %211 = vmatpush2.msra.mxu0 %v92
    %212 = vmatprep.subr.mxu0 %v91
    %213 = vmatpush2.msra.mxu0 %v90
    %214 = vmatprep.subr.mxu0 %v89
    %215 = vmatpush2.msra.mxu0 %v88
    %216 = vmatprep.subr.mxu0 %v87
    %217 = vmatpush2.msra.mxu0 %v86
    %218 = vmatprep.subr.mxu0 %v85
    %219 = vmatpush2.msra.mxu0 %v84
    %220 = vmatprep.subr.mxu0 %v83
    %221 = vmatpush2.msra.mxu0 %v82
    %222 = vmatprep.subr.mxu0 %v81
    %223 = vmatpush2.msra.mxu0 %v80
    %224 = vmatprep.mubr.f32.mxu0 %v137
    %225 = vmatmul.mubr.f32.gmra.mxu0 %v136
    %v226 = vpop.f32.mrf.mxu0
    %v227 = vadd.f32 0.0, %v226
    %v228 = vpop.f32.mrf.mxu0
    %v229 = vadd.f32 0.0, %v228
    %230 = vmatprep.mubr.f32.mxu0 %v155
    %231 = vmatmul.mubr.f32.gmra.mxu0 %v154
    %v232 = vpop.f32.mrf.mxu0
    %v233 = vadd.f32 0.0, %v232
    %v234 = vpop.f32.mrf.mxu0
    %v235 = vadd.f32 0.0, %v234
    %236 = vdwg.mxu0
    %v241 = vcombine.low %v227, %v229
    %v242 = vcombine.high %v227, %v229
    %v244 = vunpack.c.l.s4 1983009808
    %v245 = vunpack.c.0.s8 %v244
    %v246 = vlaneseq
    %v247 = vshrl.u32 %v246, 7
    %v248 = vsub.s32 %v245, %v247
    %v249 = vrot.slane %v241, %v248
    %v251 = vunpack.c.l.s4 1983009808
    %v252 = vunpack.c.0.s8 %v251
    %v253 = vlaneseq
    %v254 = vshrl.u32 %v253, 7
    %v255 = vsub.s32 %v252, %v254
    %v256 = vrot.slane %v242, %v255
    %v257 = vcombine.high %v249, %v249
    %v258 = vcombine.high %v256, %v256
    %v259 = vcombine.low %v233, %v235
    %v260 = vcombine.high %v233, %v235
    %v262 = vunpack.c.l.s4 1983009808
    %v263 = vunpack.c.0.s8 %v262
    %v264 = vlaneseq
    %v265 = vshrl.u32 %v264, 7
    %v266 = vsub.s32 %v263, %v265
    %v267 = vrot.slane %v259, %v266
    %v269 = vunpack.c.l.s4 1983009808
    %v270 = vunpack.c.0.s8 %v269
    %v271 = vlaneseq
    %v272 = vshrl.u32 %v271, 7
    %v273 = vsub.s32 %v270, %v272
    %v274 = vrot.slane %v260, %v273
    %v275 = vcombine.high %v267, %v267
    %v276 = vcombine.high %v274, %v274
    %285 = vst [vmem:[#allocation7] sm:$0xf] %v249
    %286 = vst [vmem:[#allocation7 + $0x4] sm:$0xf] %v257
    %287 = vst [vmem:[#allocation7 + $0x8] sm:$0xf] %v256
    %288 = vst [vmem:[#allocation7 + $0xc] sm:$0xf] %v258
    %289 = vst [vmem:[#allocation7 + $0x10] sm:$0xf] %v267
    %290 = vst [vmem:[#allocation7 + $0x14] sm:$0xf] %v275
    %291 = vst [vmem:[#allocation7 + $0x18] sm:$0xf] %v274
    %292 = vst [vmem:[#allocation7 + $0x1c] sm:$0xf] %v276
    // Predicated region
    $region18: #{tpu_custom_call.1} parent=1 // pred_check
      _
    $region19: #{tpu_custom_call.1} parent=1 // pred_check_branch
      %294 = sbr.rel (0) target = $region21
    $region20: #{tpu_custom_call.1} parent=1 // pred_region
      %s296 = ssub.s32 512, 64
      %297 = vsyncadd [#allocation4], %s296
      %s298 = sshll.u32 [#allocation7], 4
      %s299 = int_to_ptr.vmem [resolvable:$true] %s298
      %304 = dma.vmem_to_hbm [thread:$0]  %s299, 64, %s2, [#allocation4], 64, 64, 4
    $region21: #{tpu_custom_call.1} parent=1 // pred_fallthru
      _
    // Predicated region
    $region22: #{tpu_custom_call.1} parent=1 // pred_check
      _
    $region23: #{tpu_custom_call.1} parent=1 // pred_check_branch
      %306 = sbr.rel (0) target = $region25
    $region24: #{tpu_custom_call.1} parent=1 // pred_region
      %307 = dma.done [#allocation4], 512
    $region25: #{tpu_custom_call.1} parent=1 // pred_fallthru
      _
    %308 = vsyncpa [#allocation3], 1
    %309 = vsyncpa [#allocation6], 1
    %310 = vsyncpa [#allocation4], 1

</llo_original>
